<compile_context>
chip_gen: v6e
topology: v6e:2x2x1
jax: 0.10.0
libtpu: 0.0.40
codegen_flags: <defaults>
</compile_context>

<pallas_src>
import jax
import jax.numpy as jnp
import numpy as np
from jax import lax
from jax.experimental import pallas as pl
from jax.experimental.pallas import tpu as pltpu

GAMMA = 2.0          # module default; kernel hard-codes the square (no pow)
IGNORE_INDEX = -100


def _round_up(x, m):
    return ((x + m - 1) // m) * m


def _device_kind():
    try:
        return jax.devices()[0].device_kind.lower()
    except Exception:
        return ""


def _focal_loss_kernel(x_ref, t_ref, out_ref):
    i = pl.program_id(1)                 # inner ("arbitrary") reduction axis
    n_classes = x_ref.shape[1]

    @pl.when(i == 0)
    def _init():
        out_ref[0, 0] = 0.0
        out_ref[0, 1] = 0.0

    x = x_ref[...].astype(jnp.float32)   # (TN, C)
    t = t_ref[...]                       # (TN, 1) int32

    # log-softmax pieces over the class (lane) axis; exp(z) computed once.
    m = jnp.max(x, axis=1, keepdims=True)                 # (TN, 1)
    z = x - m                                             # (TN, C)
    e = jnp.exp(z)                                        # (TN, C) single full-width exp
    lse = jnp.log(jnp.sum(e, axis=1, keepdims=True))      # (TN, 1)

    # Gather z at the target column (one-hot masked lane reduce), THEN apply
    # the focal modulation on the gathered (TN, 1) column only.
    col = lax.broadcasted_iota(jnp.int32, x.shape, 1)     # (TN, C)
    onehot = col == t                                     # never true for t = -100 / pad rows
    z_t = jnp.sum(jnp.where(onehot, z, 0.0), axis=1, keepdims=True)   # (TN, 1)

    valid = t != IGNORE_INDEX                             # (TN, 1)
    in_range = (t >= 0) & (t < n_classes)                 # masks ignore / pad / garbage rows
    log_pt_t = z_t - lse                                  # (TN, 1)
    pt_t = jnp.exp(log_pt_t)                              # (TN, 1) tiny EUP cost
    one_m = 1.0 - pt_t
    focal = one_m * one_m * log_pt_t                      # (1 - pt)^2 * log_pt

    # Reduce the (TN,1) columns to scalars each step (mostly-idle XLU slot) and
    # accumulate into the SMEM-resident output block. This replaces the old
    # lane-sparse (TN,1) VMEM "+=" accumulators that saturated the vst slot.
    step_sum = jnp.sum(jnp.where(in_range, -focal, 0.0))
    step_cnt = jnp.sum(valid.astype(jnp.float32))
    out_ref[0, 0] += step_sum
    out_ref[0, 1] += step_cnt


def focal_loss(logits, targets, *, tile_n=None, num_shards=None):
    """logits: [N, C] float; targets: [N] int. Returns scalar mean focal loss."""
    N, C = logits.shape
    targets = targets.astype(jnp.int32)

    kind = _device_kind()
    is_v7 = "v7" in kind

    # Shard axis only pays off on 2-TensorCore v7x; it is pure overhead on
    # single-TC v5e/v6e, so default it off there.
    if num_shards is None:
        num_shards = 2 if is_v7 else 1
    num_shards = max(1, int(num_shards))

    # ---- tile selection (memory-bound: biggest block that stays in budget) ----
    # Total VMEM footprint ~= (2x double-buffered input + ~4 full-width f32
    # in-kernel temporaries) * block_bytes ~= 6x block_bytes, using the
    # lane-padded width (C rounds up to 128 lanes inside vregs/VMEM).
    if is_v7:
        block_budget = 4 * 1024 * 1024     # v7x: 64 MiB physical VMEM
        vmem_limit = 48 * 1024 * 1024
    else:
        block_budget = 8 * 1024 * 1024     # v5e/v6e: 128 MiB physical VMEM
        vmem_limit = 64 * 1024 * 1024

    c_pad = _round_up(C, 128)              # lane padding: 128/C overhead for small C
    bytes_per_row = c_pad * 4              # kernel works in f32 vregs
    # TODO(synk): for extremely large C (full row >> block budget) the class
    # axis itself would need tiling; not needed for typical class counts.
    if tile_n is None:
        cap = block_budget // bytes_per_row
        cap = int(max(8, (cap // 8) * 8))
    else:
        cap = max(8, (int(tile_n) // 8) * 8)

    def _plan(shards):
        rows_per_shard = _round_up(-(-N // shards), 8)
        bps = -(-rows_per_shard // cap)
        tile_rows = _round_up(-(-rows_per_shard // bps), 8)
        return shards, bps, tile_rows

    num_shards, bps, tile_rows = _plan(num_shards)
    # The logits are NOT padded; edge blocks may partially overhang row N and
    # the garbage rows are masked via padded (ignore_index) targets. Make sure
    # no block lies *entirely* past row N (fall back to a single shard then).
    if (num_shards * bps - 1) * tile_rows >= N:
        num_shards, bps, tile_rows = _plan(1)

    n_pad = num_shards * bps * tile_rows
    if n_pad != N:
        # Only the tiny 1-D targets are padded (N int32s); no HBM copy of the
        # bandwidth-critical [N, C] logits.
        targets = jnp.pad(targets, (0, n_pad - N), constant_values=IGNORE_INDEX)
    t2d = targets.reshape(n_pad, 1)

    itemsize = int(jnp.dtype(logits.dtype).itemsize)
    cost = pl.CostEstimate(
        flops=5 * N * C,
        transcendentals=N * C,
        bytes_accessed=N * C * itemsize + n_pad * 4 + num_shards * 8,
    )

    partials = pl.pallas_call(
        _focal_loss_kernel,
        out_shape=jax.ShapeDtypeStruct((num_shards, 2), jnp.float32),
        grid_spec=pltpu.PrefetchScalarGridSpec(
            num_scalar_prefetch=0,
            grid=(num_shards, bps),
            in_specs=[
                # Class axis kept at full extent C (legal for any C); the DMA
                # only moves the real columns of the current row block.
                pl.BlockSpec((tile_rows, C), lambda c, i: (c * bps + i, 0)),
                pl.BlockSpec((tile_rows, 1), lambda c, i: (c * bps + i, 0)),
            ],
            out_specs=pl.BlockSpec(
                (1, 2), lambda c, i: (c, 0), memory_space=pltpu.SMEM
            ),
        ),
        compiler_params=pltpu.CompilerParams(
            dimension_semantics=("parallel", "arbitrary"),
            vmem_limit_bytes=vmem_limit,
        ),
        cost_estimate=cost,
    )(logits, t2d)

    num = jnp.sum(partials[:, 0])
    den = jnp.sum(partials[:, 1])
    # NOTE: if every row is ignore_index this is nan, matching PyTorch
    # nll_loss(reduction='mean') behaviour. Targets that are out of range but
    # not -100 are counted in the denominator and excluded from the numerator
    # (PyTorch would raise); only matters for malformed inputs.
    return num / den


def _focal_loss_ref(logits, targets):
    log_pt = jax.nn.log_softmax(logits.astype(jnp.float32), axis=1)
    pt = jnp.exp(log_pt)
    mod = (1.0 - pt) ** GAMMA * log_pt
    valid = targets != IGNORE_INDEX
    safe_t = jnp.where(valid, targets, 0)
    picked = jnp.take_along_axis(mod, safe_t[:, None], axis=1)[:, 0]
    num = -jnp.sum(jnp.where(valid, picked, 0.0))
    den = jnp.sum(valid.astype(jnp.float32))
    return num / den


if __name__ == "__main__":
    key = jax.random.PRNGKey(0)
    k1, k2, k3, k4 = jax.random.split(key, 4)

    # Small shapes consistent with the module: [N, C] logits, [N] int targets.
    N, C = 16, 32
    logits = jax.random.normal(k1, (N, C), dtype=jnp.float32)
    targets = jax.random.randint(k2, (N,), 0, C, dtype=jnp.int32)
    # Mark a couple of rows as ignored to exercise ignore_index masking.
    targets = targets.at[3].set(IGNORE_INDEX).at[10].set(IGNORE_INDEX)

    loss = jax.block_until_ready(focal_loss(logits, targets))
    ref = jax.block_until_ready(_focal_loss_ref(logits, targets))
    assert np.allclose(np.asarray(loss), np.asarray(ref), rtol=1e-5, atol=1e-6), (
        loss, ref)

    # A second (still small) shape that exercises unpadded-logits ragged edge
    # blocks with non-multiple-of-8 N and non-power-of-two C.
    N2, C2 = 50, 96
    logits2 = jax.random.normal(k3, (N2, C2), dtype=jnp.float32)
    targets2 = jax.random.randint(k4, (N2,), 0, C2, dtype=jnp.int32)
    targets2 = targets2.at[0].set(IGNORE_INDEX).at[37].set(IGNORE_INDEX)

    loss2 = jax.block_until_ready(focal_loss(logits2, targets2))
    ref2 = jax.block_until_ready(_focal_loss_ref(logits2, targets2))
    assert np.allclose(np.asarray(loss2), np.asarray(ref2), rtol=1e-5, atol=1e-6), (
        loss2, ref2)

    print("KERNEL_OK")
</pallas_src>

<mosaic_0001>
module attributes {stable_mosaic.version = 11 : i64} {
  func.func @_focal_loss_kernel(%arg0: i32, %arg1: i32, %arg2: memref<16x32xf32, #tpu.memory_space<vmem>>, %arg3: memref<16x1xi32, #tpu.memory_space<vmem>>, %arg4: memref<1x2xf32, #tpu.memory_space<smem>>) attributes {dimension_semantics = [#tpu.dimension_semantics<parallel>, #tpu.dimension_semantics<arbitrary>], iteration_bounds = array<i64: 1, 1>, scalar_prefetch = 0 : i64, scratch_operands = 0 : i64, tpu.core_type = #tpu.core_type<tc>, window_params = [{transform_indices = @transform_0, window_bounds = array<i64: 16, 32>}, {transform_indices = @transform_1, window_bounds = array<i64: 16, 1>}, {transform_indices = @transform_2, window_bounds = array<i64: 1, 2>}]} {
    %c0_i32 = arith.constant 0 : i32
    %0 = arith.cmpi eq, %arg1, %c0_i32 : i32
    %1 = arith.extui %0 : i1 to i32
    %c0_i32_0 = arith.constant 0 : i32
    %2 = arith.cmpi ne, %1, %c0_i32_0 : i32
    scf.if %2 {
      %cst_20 = arith.constant 0.000000e+00 : f32
      %c0_21 = arith.constant 0 : index
      %c0_22 = arith.constant 0 : index
      %53 = memref.load %arg4[%c0_21, %c0_22] : memref<1x2xf32, #tpu.memory_space<smem>>
      memref.store %cst_20, %arg4[%c0_21, %c0_22] : memref<1x2xf32, #tpu.memory_space<smem>>
      %cst_23 = arith.constant 0.000000e+00 : f32
      %c0_24 = arith.constant 0 : index
      %c1_25 = arith.constant 1 : index
      %54 = memref.load %arg4[%c0_24, %c1_25] : memref<1x2xf32, #tpu.memory_space<smem>>
      memref.store %cst_23, %arg4[%c0_24, %c1_25] : memref<1x2xf32, #tpu.memory_space<smem>>
    } else {
    }
    %c0 = arith.constant 0 : index
    %c0_1 = arith.constant 0 : index
    %3 = vector.load %arg2[%c0, %c0_1] : memref<16x32xf32, #tpu.memory_space<vmem>>, vector<16x32xf32>
    %c0_2 = arith.constant 0 : index
    %c0_3 = arith.constant 0 : index
    %4 = vector.load %arg3[%c0_2, %c0_3] : memref<16x1xi32, #tpu.memory_space<vmem>>, vector<16x1xi32>
    %cst = arith.constant dense<0xFF800000> : vector<16xf32>
    %5 = vector.multi_reduction <maximumf>, %3, %cst [1] : vector<16x32xf32> to vector<16xf32>
    %6 = vector.shape_cast %5 : vector<16xf32> to vector<16x1xf32>
    %7 = vector.broadcast %6 : vector<16x1xf32> to vector<16x32xf32>
    %8 = arith.subf %3, %7 : vector<16x32xf32>
    %9 = math.exp %8 : vector<16x32xf32>
    %cst_4 = arith.constant dense<0.000000e+00> : vector<16xf32>
    %10 = vector.multi_reduction <add>, %9, %cst_4 [1] : vector<16x32xf32> to vector<16xf32>
    %11 = vector.shape_cast %10 : vector<16xf32> to vector<16x1xf32>
    %12 = math.log %11 : vector<16x1xf32>
    %13 = tpu.iota {dimensions = array<i32: 1>} : vector<16x32xi32>
    %14 = vector.broadcast %4 : vector<16x1xi32> to vector<16x32xi32>
    %15 = arith.cmpi eq, %13, %14 : vector<16x32xi32>
    %cst_5 = arith.constant 0.000000e+00 : f32
    %16 = vector.broadcast %cst_5 : f32 to vector<16x32xf32>
    %17 = arith.select %15, %8, %16 : vector<16x32xi1>, vector<16x32xf32>
    %cst_6 = arith.constant dense<0.000000e+00> : vector<16xf32>
    %18 = vector.multi_reduction <add>, %17, %cst_6 [1] : vector<16x32xf32> to vector<16xf32>
    %19 = vector.shape_cast %18 : vector<16xf32> to vector<16x1xf32>
    %c-100_i32 = arith.constant -100 : i32
    %20 = vector.broadcast %c-100_i32 : i32 to vector<16x1xi32>
    %21 = arith.cmpi ne, %4, %20 : vector<16x1xi32>
    %c0_i32_7 = arith.constant 0 : i32
    %22 = vector.broadcast %c0_i32_7 : i32 to vector<16x1xi32>
    %23 = arith.cmpi sge, %4, %22 : vector<16x1xi32>
    %c32_i32 = arith.constant 32 : i32
    %24 = vector.broadcast %c32_i32 : i32 to vector<16x1xi32>
    %25 = arith.cmpi slt, %4, %24 : vector<16x1xi32>
    %26 = arith.andi %23, %25 : vector<16x1xi1>
    %27 = arith.subf %19, %12 : vector<16x1xf32>
    %28 = math.exp %27 : vector<16x1xf32>
    %cst_8 = arith.constant 1.000000e+00 : f32
    %29 = vector.broadcast %cst_8 : f32 to vector<16x1xf32>
    %30 = arith.subf %29, %28 : vector<16x1xf32>
    %31 = arith.mulf %30, %30 : vector<16x1xf32>
    %32 = arith.mulf %31, %27 : vector<16x1xf32>
    %cst_9 = arith.constant 0.000000e+00 : f32
    %33 = vector.broadcast %cst_9 : f32 to vector<16x1xf32>
    %34 = arith.subf %33, %32 : vector<16x1xf32>
    %cst_10 = arith.constant 0.000000e+00 : f32
    %35 = vector.broadcast %cst_10 : f32 to vector<16x1xf32>
    %36 = arith.select %26, %34, %35 : vector<16x1xi1>, vector<16x1xf32>
    %37 = vector.shape_cast %36 : vector<16x1xf32> to vector<1x16x1xf32>
    %cst_11 = arith.constant dense<0.000000e+00> : vector<1xf32>
    %38 = vector.multi_reduction <add>, %37, %cst_11 [1, 2] : vector<1x16x1xf32> to vector<1xf32>
    %39 = vector.shape_cast %38 : vector<1xf32> to vector<1x1x1xf32>
    %40 = vector.extract %39[0, 0, 0] : f32 from vector<1x1x1xf32>
    %41 = arith.extui %21 : vector<16x1xi1> to vector<16x1xi32>
    %42 = arith.sitofp %41 : vector<16x1xi32> to vector<16x1xf32>
    %43 = vector.shape_cast %42 : vector<16x1xf32> to vector<1x16x1xf32>
    %cst_12 = arith.constant dense<0.000000e+00> : vector<1xf32>
    %44 = vector.multi_reduction <add>, %43, %cst_12 [1, 2] : vector<1x16x1xf32> to vector<1xf32>
    %45 = vector.shape_cast %44 : vector<1xf32> to vector<1x1x1xf32>
    %46 = vector.extract %45[0, 0, 0] : f32 from vector<1x1x1xf32>
    %c0_13 = arith.constant 0 : index
    %c0_14 = arith.constant 0 : index
    %47 = memref.load %arg4[%c0_13, %c0_14] : memref<1x2xf32, #tpu.memory_space<smem>>
    %48 = arith.addf %47, %40 : f32
    %c0_15 = arith.constant 0 : index
    %c0_16 = arith.constant 0 : index
    %49 = memref.load %arg4[%c0_15, %c0_16] : memref<1x2xf32, #tpu.memory_space<smem>>
    memref.store %48, %arg4[%c0_15, %c0_16] : memref<1x2xf32, #tpu.memory_space<smem>>
    %c0_17 = arith.constant 0 : index
    %c1 = arith.constant 1 : index
    %50 = memref.load %arg4[%c0_17, %c1] : memref<1x2xf32, #tpu.memory_space<smem>>
    %51 = arith.addf %50, %46 : f32
    %c0_18 = arith.constant 0 : index
    %c1_19 = arith.constant 1 : index
    %52 = memref.load %arg4[%c0_18, %c1_19] : memref<1x2xf32, #tpu.memory_space<smem>>
    memref.store %51, %arg4[%c0_18, %c1_19] : memref<1x2xf32, #tpu.memory_space<smem>>
    return
  }
  func.func @transform_0(%arg0: i32, %arg1: i32) -> (i32, i32) {
    %c1_i32 = arith.constant 1 : i32
    %0 = arith.muli %arg0, %c1_i32 : i32
    %1 = arith.addi %0, %arg1 : i32
    %c0_i32 = arith.constant 0 : i32
    %c0_i32_0 = arith.constant 0 : i32
    return %1, %c0_i32 : i32, i32
  }
  func.func @transform_1(%arg0: i32, %arg1: i32) -> (i32, i32) {
    %c1_i32 = arith.constant 1 : i32
    %0 = arith.muli %arg0, %c1_i32 : i32
    %1 = arith.addi %0, %arg1 : i32
    %c0_i32 = arith.constant 0 : i32
    %c0_i32_0 = arith.constant 0 : i32
    return %1, %c0_i32 : i32, i32
  }
  func.func @transform_2(%arg0: i32, %arg1: i32) -> (i32, i32) {
    %c0_i32 = arith.constant 0 : i32
    %c0_i32_0 = arith.constant 0 : i32
    return %arg0, %c0_i32 : i32, i32
  }
}

</mosaic_0001>

<llo_original>
// kernel: tpu_custom_call.1
$region0: #{tpu_custom_call.1}
  #allocation0 [shape = 'u32[]', space=smem, size = 0x4, offset = 0x4, fixed_abs, tag = 'smem constant byte address 0x4 - core index']
  #allocation1 [shape = 'u32[144,128]{1,0:T(1,128)}', space=vmem, size = 0x12000, scoped, tag = 'internal scratch']
  %s0 = inlined_call_operand.vmem [shape: f32[16,32], index: 0, kind: input, shape index: {}]
  %s1 = inlined_call_operand.vmem [shape: s32[16,1], index: 1, kind: input, shape index: {}]
  %s2 = inlined_call_operand.hbm [shape: f32[1,2], index: 2, kind: output, shape index: {}]
  %s3 = sld [smem:[#allocation0]]
  $region22: #{tpu_custom_call.1} parent=0
    _
  %s5 = ssub.s32 1, %s3
  %s6 = scalar_select 0, %s5, %s3
  $region1: #{tpu_custom_call.1} parent=0
    #allocation2 [shape = 'u8[512]{0}', space=smem, size = 0x200, scoped, tag = 'output window, operand 0, single buffered']
    #allocation3 [shape = 's32[1]{0}', space=sflag, size = 0x4, scoped, tag = 'scoped memory for tpu_custom_call.1']
    %7 = vsyncpa [#allocation3], 0
    // Predicated region
    $region2: #{tpu_custom_call.1} parent=1 // pred_check
      _
    $region3: #{tpu_custom_call.1} parent=1 // pred_check_branch
      %9 = sbr.rel (0) target = $region5
    $region4: #{tpu_custom_call.1} parent=1 // pred_region
      %s10 = sadd.s32 0, 0
      %s11 = smul.u32 2, %s10
      %p12 = scmp.lt.s32.totalorder %s11, 1
      %s13 = scalar_select %p12, %s11, 1
      %s14 = smul.addr %s13, 8
      %s15 = scalar_lea.vmem %s0, %s14
      %s16 = sadd.s32 0, 0
      %s17 = smul.u32 2, %s16
    $region5: #{tpu_custom_call.1} parent=1 // pred_fallthru
      _
    // Predicated region
    $region6: #{tpu_custom_call.1} parent=1 // pred_check
      _
    $region7: #{tpu_custom_call.1} parent=1 // pred_check_branch
      %19 = sbr.rel (0) target = $region9
    $region8: #{tpu_custom_call.1} parent=1 // pred_region
      %s20 = sadd.s32 0, 0
      %s21 = smul.u32 2, %s20
      %p22 = scmp.lt.s32.totalorder %s21, 1
      %s23 = scalar_select %p22, %s21, 1
      %s24 = smul.addr %s23, 8
      %s25 = scalar_lea.vmem %s1, %s24
      %s26 = sadd.s32 0, 0
      %s27 = smul.u32 2, %s26
    $region9: #{tpu_custom_call.1} parent=1 // pred_fallthru
      _
    %s28 = sadd.s32 0, 0
    %s29 = smul.u32 2, %s28
    %p30 = scmp.lt.s32.totalorder %s29, 1
    %s31 = scalar_select %p30, %s29, 1
    %s32 = smul.addr %s31, 8
    %s33 = scalar_lea.vmem %s0, %s32
    %s34 = sadd.s32 0, 0
    %s35 = smul.u32 2, %s34
    %p36 = scmp.lt.s32.totalorder %s35, 1
    %s37 = scalar_select %p36, %s35, 1
    %s38 = smul.addr %s37, 8
    %s39 = scalar_lea.vmem %s1, %s38
    %s40 = sadd.s32 0, 0
    %s41 = smul.u32 2, %s40
    %p42 = scmp.lt.s32.totalorder %s41, 1
    %s43 = scalar_select %p42, %s41, 1
    %s44 = smul.addr %s43, 8
    %s45 = scalar_lea.vmem %s0, %s44
    %s46 = sadd.s32 0, 0
    %s47 = smul.u32 2, %s46
    %s48 = sadd.s32 0, 0
    %s49 = smul.u32 2, %s48
    %p50 = scmp.lt.s32.totalorder %s49, 1
    %s51 = scalar_select %p50, %s49, 1
    %s52 = smul.addr %s51, 8
    %s53 = scalar_lea.vmem %s1, %s52
    %s54 = sadd.s32 0, 0
    %s55 = smul.u32 2, %s54
    %p56 = scmp.eq.s32.totalorder 0, 0
    // Predicated region
    $region10: #{tpu_custom_call.1} parent=1 // pred_check
      %p57 = pneg %p56
    $region11: #{tpu_custom_call.1} parent=1 // pred_check_branch
      %59 = sbr.rel (%p57) target = $region13
    $region12: #{tpu_custom_call.1} parent=1 // pred_region
      %s60 = scalar_lea.smem [#allocation2], 0
      %61 = sst [smem:[%s60]] 0.0
      %s62 = scalar_lea.smem [#allocation2], 1
      %63 = sst [smem:[%s62]] 0.0
    $region13: #{tpu_custom_call.1} parent=1 // pred_fallthru
      _
    %v64 = vld [vmem:[%s45] sm:$0xff]
    %v65 = vld [vmem:[%s45 + $0x8] sm:$0xff]
    %v66 = vld [vmem:[%s53] sm:$0xff]
    %v67 = vld [vmem:[%s53 + $0x8] sm:$0xff]
    %vm68 = vcmask 261120
    %v69 = vsel %vm68, %v64, -inf
    %70 = vmax.xlane.f32.xlu0 %v69
    %v71 = vpop.xlane.xlu0 %70
    %v72 = vsel %vm68, %v65, -inf
    %73 = vmax.xlane.f32.xlu0 %v72
    %v74 = vpop.xlane.xlu0 %73
    %v75 = vsub.f32 %v64, %v71
    %v76 = vsub.f32 %v65, %v74
    %v77 = vmul.f32 %v75, 1.442695
    %v78 = vpow.pop %v77
    %v79 = vmul.f32 %v76, 1.442695
    %v80 = vpow.pop %v79
    %v81 = vsel %vm68, %v78, 0.0
    %82 = vadd.xlane.f32.xlu0 %v81
    %v83 = vpop.xlane.xlu0 %82
    %v84 = vsel %vm68, %v80, 0.0
    %85 = vadd.xlane.f32.xlu0 %v84
    %v86 = vpop.xlane.xlu0 %85
    %v87 = vlog2.pop %v83
    %v88 = vmul.f32 %v87, 0.6931472
    %v89 = vlog2.pop %v86
    %v90 = vmul.f32 %v89, 0.6931472
    %v91 = vlaneseq
    %v92 = vand.u32 %v91, 127
    %93 = vset.pattern.permute.xlu0 0
    %94 = vperm.xlu0 %93, %v66
    %v95 = vpop.permute.xlu0 %94
    %96 = vset.pattern.permute.xlu0 0
    %97 = vperm.xlu0 %96, %v67
    %v98 = vpop.permute.xlu0 %97
    %vm99 = vcmp.eq.s32.totalorder %v92, %v95
    %vm100 = vcmp.eq.s32.totalorder %v92, %v98
    %v101 = vsel %vm99, %v75, 0.0
    %v102 = vsel %vm100, %v76, 0.0
    %v103 = vsel %vm68, %v101, 0.0
    %104 = vadd.xlane.f32.xlu0 %v103
    %v105 = vpop.xlane.xlu0 %104
    %v106 = vsel %vm68, %v102, 0.0
    %107 = vadd.xlane.f32.xlu0 %v106
    %v108 = vpop.xlane.xlu0 %107
    %vm109 = vcmp.ne.s32.totalorder %v66, 4294967196
    %vm110 = vcmp.ne.s32.totalorder %v67, 4294967196
    %vm111 = vcmp.ge.s32.totalorder %v66, 0
    %vm112 = vcmp.ge.s32.totalorder %v67, 0
    %vm113 = vcmp.lt.s32.totalorder %v66, 32
    %vm114 = vcmp.lt.s32.totalorder %v67, 32
    %vm115 = vmand %vm111, %vm113
    %vm116 = vmand %vm112, %vm114
    %v117 = vsub.f32 %v105, %v88
    %v118 = vsub.f32 %v108, %v90
    %v119 = vmul.f32 %v117, 1.442695
    %v120 = vpow.pop %v119
    %v121 = vmul.f32 %v118, 1.442695
    %v122 = vpow.pop %v121
    %v123 = vsub.f32 1.0, %v120
    %v124 = vsub.f32 1.0, %v122
    %v125 = vmul.f32 %v123, %v123
    %v126 = vmul.f32 %v124, %v124
    %v127 = vmul.f32 %v125, %v117
    %v128 = vmul.f32 %v126, %v118
    %v129 = vsub.f32 0.0, %v127
    %v130 = vsub.f32 0.0, %v128
    %v131 = vsel %vm115, %v129, 0.0
    %v132 = vsel %vm116, %v130, 0.0
    %vm133 = vcmask 7168
    %v134 = vsel %vm133, %v131, 0.0
    %v135 = vsel %vm133, %v132, 0.0
    %v136 = vadd.f32 %v134, %v135
    %137 = vadd.xlane.f32.xlu0 %v136
    %v138 = vpop.xlane.xlu0 %137
    %v139 = vrot.slane %v138, 4
    %v140 = vadd.f32 %v138, %v139
    %v141 = vrot.slane %v140, 2
    %v142 = vadd.f32 %v140, %v141
    %v143 = vrot.slane %v142, 1
    %v144 = vadd.f32 %v142, %v143
    %s145 = vtos %v144
    %v146 = vsel %vm109, 1, 0
    %v147 = vsel %vm110, 1, 0
    %v148 = vcvt.s32.f32 %v146
    %v149 = vcvt.s32.f32 %v147
    %v150 = vsel %vm133, %v148, 0.0
    %v151 = vsel %vm133, %v149, 0.0
    %v152 = vadd.f32 %v150, %v151
    %153 = vadd.xlane.f32.xlu0 %v152
    %v154 = vpop.xlane.xlu0 %153
    %v155 = vrot.slane %v154, 4
    %v156 = vadd.f32 %v154, %v155
    %v157 = vrot.slane %v156, 2
    %v158 = vadd.f32 %v156, %v157
    %v159 = vrot.slane %v158, 1
    %v160 = vadd.f32 %v158, %v159
    %s161 = vtos %v160
    %s162 = sld [smem:[#allocation2]]
    %s163 = sadd.f32 %s162, %s145
    %s164 = scalar_lea.smem [#allocation2], 0
    %165 = sst [smem:[%s164]] %s163
    %s166 = sld [smem:[#allocation2 + $0x1]]
    %s167 = sadd.f32 %s166, %s161
    %s168 = scalar_lea.smem [#allocation2], 1
    %169 = sst [smem:[%s168]] %s167
    // Predicated region
    $region14: #{tpu_custom_call.1} parent=1 // pred_check
      _
    $region15: #{tpu_custom_call.1} parent=1 // pred_check_branch
      %171 = sbr.rel (0) target = $region17
    $region16: #{tpu_custom_call.1} parent=1 // pred_region
      %s173 = ssub.s32 16, 16
      %174 = vsyncadd [#allocation3], %s173
      %177 = dma.smem_to_hbm [#allocation2], 16, %s2, [#allocation3]
    $region17: #{tpu_custom_call.1} parent=1 // pred_fallthru
      _
    // Predicated region
    $region18: #{tpu_custom_call.1} parent=1 // pred_check
      _
    $region19: #{tpu_custom_call.1} parent=1 // pred_check_branch
      %179 = sbr.rel (0) target = $region21
    $region20: #{tpu_custom_call.1} parent=1 // pred_region
      %180 = dma.done [#allocation3], 16
    $region21: #{tpu_custom_call.1} parent=1 // pred_fallthru
      _
    %181 = sfence
    %182 = vsyncpa [#allocation3], 1

</llo_original>
